<compile_context>
chip_gen: v7x
topology: tpu7x:2x2x1
jax: 0.10.0
libtpu: 0.0.40
codegen_flags: <defaults>
</compile_context>

<pallas_src>
import functools

import jax
import jax.numpy as jnp
from jax.experimental import pallas as pl
from jax.experimental.pallas import tpu as pltpu

INPUT_SIZE = 784
HIDDEN = 50
NUM_CLASSES = 10

# Lane-dense padded feature widths.
HIDDEN_PAD = 128
OUT_PAD = 128

DEFAULT_BATCH_TILE = 512  # ~1.6 MiB x-tile (f32); 2x-buffered stays far under VMEM limits.


def _round_up(x: int, m: int) -> int:
    return ((x + m - 1) // m) * m


def mlp_kernel(x_ref, w1_ref, b1_ref, w2_ref, b2_ref, o_ref):
    # One batch tile per grid step; weights/biases resident in VMEM.
    x = x_ref[...]                                        # (TB, 784)
    b1 = b1_ref[...]                                      # (1, 128), read once
    b2 = b2_ref[...]                                      # (1, 128), read once

    h = jnp.dot(x, w1_ref[...],
                preferred_element_type=jnp.float32)       # (TB, 128) MXU
    h = jnp.maximum(h + b1, 0.0)                          # bias + ReLU, one VPU pass

    y = jnp.dot(h, w2_ref[...],
                preferred_element_type=jnp.float32)       # (TB, 128) MXU
    o_ref[...] = (y + b2).astype(o_ref.dtype)             # bias + cast, lane-dense store


@functools.partial(jax.jit, static_argnames=("batch_tile",))
def nn_forward(x, w1, b1, w2, b2, *, batch_tile: int = DEFAULT_BATCH_TILE):
    """x: (N, 784) f32. w1: (784, 50), b1: (50,), w2: (50, 10), b2: (10,)."""
    n = x.shape[0]

    # --- pad narrow feature dims to the 128-lane width (exact: zeros contribute 0) ---
    w1p = jnp.zeros((INPUT_SIZE, HIDDEN_PAD), jnp.float32).at[:, :HIDDEN].set(w1)
    b1p = jnp.zeros((1, HIDDEN_PAD), jnp.float32).at[0, :HIDDEN].set(b1)
    w2p = jnp.zeros((HIDDEN_PAD, OUT_PAD), jnp.float32).at[:HIDDEN, :NUM_CLASSES].set(w2)
    b2p = jnp.zeros((1, OUT_PAD), jnp.float32).at[0, :NUM_CLASSES].set(b2)

    # --- tile the batch; pad N up to a whole number of tiles (multiple of 8) ---
    tb = min(batch_tile, _round_up(n, 8))
    n_pad = _round_up(n, tb)
    x_pad = x if n_pad == n else jnp.pad(x, ((0, n_pad - n), (0, 0)))
    grid = (n_pad // tb,)

    flops = 2 * n_pad * INPUT_SIZE * HIDDEN_PAD + 2 * n_pad * HIDDEN_PAD * OUT_PAD
    bytes_accessed = (
        n_pad * INPUT_SIZE * 4                      # stream x
        + INPUT_SIZE * HIDDEN_PAD * 4               # w1
        + HIDDEN_PAD * OUT_PAD * 4                  # w2
        + (HIDDEN_PAD + OUT_PAD) * 4                # biases
        + n_pad * OUT_PAD * 4                       # output
    )

    out_pad = pl.pallas_call(
        mlp_kernel,
        out_shape=jax.ShapeDtypeStruct((n_pad, OUT_PAD), jnp.float32),
        grid=grid,
        in_specs=[
            # x: one batch tile per grid step (double-buffered by Pallas).
            pl.BlockSpec((tb, INPUT_SIZE), lambda i: (i, 0)),
            # weights/biases: constant index_map -> stay resident in VMEM.
            pl.BlockSpec((INPUT_SIZE, HIDDEN_PAD), lambda i: (0, 0)),
            pl.BlockSpec((1, HIDDEN_PAD), lambda i: (0, 0)),
            pl.BlockSpec((HIDDEN_PAD, OUT_PAD), lambda i: (0, 0)),
            pl.BlockSpec((1, OUT_PAD), lambda i: (0, 0)),
        ],
        out_specs=pl.BlockSpec((tb, OUT_PAD), lambda i: (i, 0)),
        compiler_params=pltpu.CompilerParams(
            dimension_semantics=("parallel",),      # dual-TC sharding on v7x
        ),
        cost_estimate=pl.CostEstimate(
            flops=flops, transcendentals=0, bytes_accessed=bytes_accessed
        ),
    )(x_pad, w1p, b1p, w2p, b2p)

    # Strip batch padding and the lane padding of the 10-class output.
    return out_pad[:n, :NUM_CLASSES]


def init_params(key):
    # Deterministic init matching nn.Linear shapes (stored transposed:
    # (in_features, out_features) so y = x @ W + b == PyTorch's x @ W.T + b).
    k1, k2, k3, k4 = jax.random.split(key, 4)
    bound1 = 1.0 / (INPUT_SIZE ** 0.5)
    bound2 = 1.0 / (HIDDEN ** 0.5)
    w1 = jax.random.uniform(k1, (INPUT_SIZE, HIDDEN), jnp.float32, -bound1, bound1)
    b1 = jax.random.uniform(k2, (HIDDEN,), jnp.float32, -bound1, bound1)
    w2 = jax.random.uniform(k3, (HIDDEN, NUM_CLASSES), jnp.float32, -bound2, bound2)
    b2 = jax.random.uniform(k4, (NUM_CLASSES,), jnp.float32, -bound2, bound2)
    return w1, b1, w2, b2


if __name__ == "__main__":
    key = jax.random.PRNGKey(0)
    kx, kp = jax.random.split(key)
    batch = 2
    x = jax.random.normal(kx, (batch, INPUT_SIZE), jnp.float32)
    w1, b1, w2, b2 = init_params(kp)

    out = nn_forward(x, w1, b1, w2, b2)
    out = jax.block_until_ready(out)

    # Reference check in plain JAX (same math as the PyTorch forward).
    ref = jnp.maximum(x @ w1 + b1, 0.0) @ w2 + b2
    assert out.shape == (batch, NUM_CLASSES)
    assert jnp.allclose(out, ref, atol=1e-4, rtol=1e-4)

    print("KERNEL_OK")
</pallas_src>

<mosaic_0001>
module attributes {stable_mosaic.version = 11 : i64} {
  func.func @mlp_kernel(%arg0: i32, %arg1: memref<8x784xf32, #tpu.memory_space<vmem>>, %arg2: memref<784x128xf32, #tpu.memory_space<vmem>>, %arg3: memref<1x128xf32, #tpu.memory_space<vmem>>, %arg4: memref<128x128xf32, #tpu.memory_space<vmem>>, %arg5: memref<1x128xf32, #tpu.memory_space<vmem>>, %arg6: memref<8x128xf32, #tpu.memory_space<vmem>>) attributes {dimension_semantics = [#tpu.dimension_semantics<parallel>], iteration_bounds = array<i64: 1>, scalar_prefetch = 0 : i64, scratch_operands = 0 : i64, tpu.core_type = #tpu.core_type<tc>, window_params = [{transform_indices = @transform_0, window_bounds = array<i64: 8, 784>}, {pipeline_mode = #tpu.pipeline_mode<synchronous>, transform_indices = @transform_1, window_bounds = array<i64: 784, 128>}, {pipeline_mode = #tpu.pipeline_mode<synchronous>, transform_indices = @transform_2, window_bounds = array<i64: 1, 128>}, {pipeline_mode = #tpu.pipeline_mode<synchronous>, transform_indices = @transform_3, window_bounds = array<i64: 128, 128>}, {pipeline_mode = #tpu.pipeline_mode<synchronous>, transform_indices = @transform_4, window_bounds = array<i64: 1, 128>}, {transform_indices = @transform_5, window_bounds = array<i64: 8, 128>}]} {
    %c0 = arith.constant 0 : index
    %c0_0 = arith.constant 0 : index
    %0 = vector.load %arg1[%c0, %c0_0] : memref<8x784xf32, #tpu.memory_space<vmem>>, vector<8x784xf32>
    %c0_1 = arith.constant 0 : index
    %c0_2 = arith.constant 0 : index
    %1 = vector.load %arg3[%c0_1, %c0_2] : memref<1x128xf32, #tpu.memory_space<vmem>>, vector<1x128xf32>
    %c0_3 = arith.constant 0 : index
    %c0_4 = arith.constant 0 : index
    %2 = vector.load %arg5[%c0_3, %c0_4] : memref<1x128xf32, #tpu.memory_space<vmem>>, vector<1x128xf32>
    %c0_5 = arith.constant 0 : index
    %c0_6 = arith.constant 0 : index
    %3 = vector.load %arg2[%c0_5, %c0_6] : memref<784x128xf32, #tpu.memory_space<vmem>>, vector<784x128xf32>
    %cst = arith.constant dense<0.000000e+00> : vector<8x128xf32>
    %4 = tpu.matmul %0, %3, %cst {dimension_numbers = #tpu.dot_dimension_numbers<[1], [0], [0], [1], [0, 0, 1, 1], [], []>} : vector<8x784xf32>, vector<784x128xf32>, vector<8x128xf32> -> vector<8x128xf32>
    %5 = vector.broadcast %1 : vector<1x128xf32> to vector<8x128xf32>
    %6 = arith.addf %4, %5 : vector<8x128xf32>
    %cst_7 = arith.constant 0.000000e+00 : f32
    %7 = vector.broadcast %cst_7 : f32 to vector<8x128xf32>
    %8 = arith.maximumf %6, %7 : vector<8x128xf32>
    %c0_8 = arith.constant 0 : index
    %c0_9 = arith.constant 0 : index
    %9 = vector.load %arg4[%c0_8, %c0_9] : memref<128x128xf32, #tpu.memory_space<vmem>>, vector<128x128xf32>
    %cst_10 = arith.constant dense<0.000000e+00> : vector<8x128xf32>
    %10 = tpu.matmul %8, %9, %cst_10 {dimension_numbers = #tpu.dot_dimension_numbers<[1], [0], [0], [1], [0, 0, 1, 1], [], []>} : vector<8x128xf32>, vector<128x128xf32>, vector<8x128xf32> -> vector<8x128xf32>
    %11 = vector.broadcast %2 : vector<1x128xf32> to vector<8x128xf32>
    %12 = arith.addf %10, %11 : vector<8x128xf32>
    %c0_11 = arith.constant 0 : index
    %c0_12 = arith.constant 0 : index
    %13 = vector.load %arg6[%c0_11, %c0_12] : memref<8x128xf32, #tpu.memory_space<vmem>>, vector<8x128xf32>
    tpu.vector_store %arg6[%c0_11, %c0_12], %12 {strides = array<i32>} : memref<8x128xf32, #tpu.memory_space<vmem>>, vector<8x128xf32>,
    return
  }
  func.func @transform_0(%arg0: i32) -> (i32, i32) {
    %c0_i32 = arith.constant 0 : i32
    %c0_i32_0 = arith.constant 0 : i32
    return %arg0, %c0_i32 : i32, i32
  }
  func.func @transform_1(%arg0: i32) -> (i32, i32) {
    %c0_i32 = arith.constant 0 : i32
    %c0_i32_0 = arith.constant 0 : i32
    %c0_i32_1 = arith.constant 0 : i32
    return %c0_i32, %c0_i32_0 : i32, i32
  }
  func.func @transform_2(%arg0: i32) -> (i32, i32) {
    %c0_i32 = arith.constant 0 : i32
    %c0_i32_0 = arith.constant 0 : i32
    %c0_i32_1 = arith.constant 0 : i32
    return %c0_i32, %c0_i32_0 : i32, i32
  }
  func.func @transform_3(%arg0: i32) -> (i32, i32) {
    %c0_i32 = arith.constant 0 : i32
    %c0_i32_0 = arith.constant 0 : i32
    %c0_i32_1 = arith.constant 0 : i32
    return %c0_i32, %c0_i32_0 : i32, i32
  }
  func.func @transform_4(%arg0: i32) -> (i32, i32) {
    %c0_i32 = arith.constant 0 : i32
    %c0_i32_0 = arith.constant 0 : i32
    %c0_i32_1 = arith.constant 0 : i32
    return %c0_i32, %c0_i32_0 : i32, i32
  }
  func.func @transform_5(%arg0: i32) -> (i32, i32) {
    %c0_i32 = arith.constant 0 : i32
    %c0_i32_0 = arith.constant 0 : i32
    return %arg0, %c0_i32 : i32, i32
  }
}

</mosaic_0001>

<llo_original>
// kernel: nn_forward.1
$region0: #{nn_forward.1}
  #allocation0 [shape = 'u32[]', space=smem, size = 0x4, offset = 0x4, fixed_abs, tag = 'smem constant byte address 0x4 - core index']
  #allocation1 [shape = 'u32[144,128]{1,0:T(1,128)}', space=vmem, size = 0x12000, scoped, tag = 'internal scratch']
  %s0 = inlined_call_operand.vmem [shape: f32[8,784], index: 0, kind: input, shape index: {}]
  %s1 = inlined_call_operand.vmem [shape: f32[784,128], index: 1, kind: input, shape index: {}]
  %s2 = inlined_call_operand.vmem [shape: f32[1,128], index: 2, kind: input, shape index: {}]
  %s3 = inlined_call_operand.vmem [shape: f32[128,128], index: 3, kind: input, shape index: {}]
  %s4 = inlined_call_operand.vmem [shape: f32[1,128], index: 4, kind: input, shape index: {}]
  %s5 = inlined_call_operand.vmem [shape: f32[8,128], index: 5, kind: output, shape index: {}]
  %s6 = sld [smem:[#allocation0]]
  $region30: #{nn_forward.1} parent=0
    _
  %s8 = ssub.s32 1, %s6
  %s9 = scalar_select 0, %s8, %s6
  // Predicated region
  $region2: #{nn_forward.1} parent=0 // pred_check
    _
  $region3: #{nn_forward.1} parent=0 // pred_check_branch
    %11 = sbr.rel (0) target = $region5
  $region4: #{nn_forward.1} parent=0 // pred_region
    _
  $region5: #{nn_forward.1} parent=0 // pred_fallthru
    _
  // Predicated region
  $region6: #{nn_forward.1} parent=0 // pred_check
    _
  $region7: #{nn_forward.1} parent=0 // pred_check_branch
    %13 = sbr.rel (0) target = $region9
  $region8: #{nn_forward.1} parent=0 // pred_region
    _
  $region9: #{nn_forward.1} parent=0 // pred_fallthru
    _
  // Predicated region
  $region10: #{nn_forward.1} parent=0 // pred_check
    _
  $region11: #{nn_forward.1} parent=0 // pred_check_branch
    %15 = sbr.rel (0) target = $region13
  $region12: #{nn_forward.1} parent=0 // pred_region
    _
  $region13: #{nn_forward.1} parent=0 // pred_fallthru
    _
  // Predicated region
  $region14: #{nn_forward.1} parent=0 // pred_check
    _
  $region15: #{nn_forward.1} parent=0 // pred_check_branch
    %17 = sbr.rel (0) target = $region17
  $region16: #{nn_forward.1} parent=0 // pred_region
    _
  $region17: #{nn_forward.1} parent=0 // pred_fallthru
    _
  // Predicated region
  $region18: #{nn_forward.1} parent=0 // pred_check
    _
  $region19: #{nn_forward.1} parent=0 // pred_check_branch
    %19 = sbr.rel (0) target = $region21
  $region20: #{nn_forward.1} parent=0 // pred_region
    _
  $region21: #{nn_forward.1} parent=0 // pred_fallthru
    _
  %v20 = vld [vmem:[%s0] sm:$0xff]
  %v21 = vld [vmem:[%s0 + $0x8] sm:$0xff]
  %v22 = vld [vmem:[%s0 + $0x10] sm:$0xff]
  %v23 = vld [vmem:[%s0 + $0x18] sm:$0xff]
  %v24 = vld [vmem:[%s0 + $0x20] sm:$0xff]
  %v25 = vld [vmem:[%s0 + $0x28] sm:$0xff]
  %v26 = vld [vmem:[%s0 + $0x30] sm:$0xff]
  %v27 = vld [vmem:[%s2] sm:$0x1]
  %v28 = vld [vmem:[%s4] sm:$0x1]
  %v29 = vld [vmem:[%s1] sm:$0xff]
  %v30 = vld [vmem:[%s1 + $0x8] sm:$0xff]
  %v31 = vld [vmem:[%s1 + $0x10] sm:$0xff]
  %v32 = vld [vmem:[%s1 + $0x18] sm:$0xff]
  %v33 = vld [vmem:[%s1 + $0x20] sm:$0xff]
  %v34 = vld [vmem:[%s1 + $0x28] sm:$0xff]
  %v35 = vld [vmem:[%s1 + $0x30] sm:$0xff]
  %v36 = vld [vmem:[%s1 + $0x38] sm:$0xff]
  %v37 = vld [vmem:[%s1 + $0x40] sm:$0xff]
  %v38 = vld [vmem:[%s1 + $0x48] sm:$0xff]
  %v39 = vld [vmem:[%s1 + $0x50] sm:$0xff]
  %v40 = vld [vmem:[%s1 + $0x58] sm:$0xff]
  %v41 = vld [vmem:[%s1 + $0x60] sm:$0xff]
  %v42 = vld [vmem:[%s1 + $0x68] sm:$0xff]
  %v43 = vld [vmem:[%s1 + $0x70] sm:$0xff]
  %v44 = vld [vmem:[%s1 + $0x78] sm:$0xff]
  %v45 = vld [vmem:[%s1 + $0x80] sm:$0xff]
  %v46 = vld [vmem:[%s1 + $0x88] sm:$0xff]
  %v47 = vld [vmem:[%s1 + $0x90] sm:$0xff]
  %v48 = vld [vmem:[%s1 + $0x98] sm:$0xff]
  %v49 = vld [vmem:[%s1 + $0xa0] sm:$0xff]
  %v50 = vld [vmem:[%s1 + $0xa8] sm:$0xff]
  %v51 = vld [vmem:[%s1 + $0xb0] sm:$0xff]
  %v52 = vld [vmem:[%s1 + $0xb8] sm:$0xff]
  %v53 = vld [vmem:[%s1 + $0xc0] sm:$0xff]
  %v54 = vld [vmem:[%s1 + $0xc8] sm:$0xff]
  %v55 = vld [vmem:[%s1 + $0xd0] sm:$0xff]
  %v56 = vld [vmem:[%s1 + $0xd8] sm:$0xff]
  %v57 = vld [vmem:[%s1 + $0xe0] sm:$0xff]
  %v58 = vld [vmem:[%s1 + $0xe8] sm:$0xff]
  %v59 = vld [vmem:[%s1 + $0xf0] sm:$0xff]
  %v60 = vld [vmem:[%s1 + $0xf8] sm:$0xff]
  %v61 = vld [vmem:[%s1 + $0x100] sm:$0xff]
  %v62 = vld [vmem:[%s1 + $0x108] sm:$0xff]
  %v63 = vld [vmem:[%s1 + $0x110] sm:$0xff]
  %v64 = vld [vmem:[%s1 + $0x118] sm:$0xff]
  %v65 = vld [vmem:[%s1 + $0x120] sm:$0xff]
  %v66 = vld [vmem:[%s1 + $0x128] sm:$0xff]
  %v67 = vld [vmem:[%s1 + $0x130] sm:$0xff]
  %v68 = vld [vmem:[%s1 + $0x138] sm:$0xff]
  %v69 = vld [vmem:[%s1 + $0x140] sm:$0xff]
  %v70 = vld [vmem:[%s1 + $0x148] sm:$0xff]
  %v71 = vld [vmem:[%s1 + $0x150] sm:$0xff]
  %v72 = vld [vmem:[%s1 + $0x158] sm:$0xff]
  %v73 = vld [vmem:[%s1 + $0x160] sm:$0xff]
  %v74 = vld [vmem:[%s1 + $0x168] sm:$0xff]
  %v75 = vld [vmem:[%s1 + $0x170] sm:$0xff]
  %v76 = vld [vmem:[%s1 + $0x178] sm:$0xff]
  %v77 = vld [vmem:[%s1 + $0x180] sm:$0xff]
  %v78 = vld [vmem:[%s1 + $0x188] sm:$0xff]
  %v79 = vld [vmem:[%s1 + $0x190] sm:$0xff]
  %v80 = vld [vmem:[%s1 + $0x198] sm:$0xff]
  %v81 = vld [vmem:[%s1 + $0x1a0] sm:$0xff]
  %v82 = vld [vmem:[%s1 + $0x1a8] sm:$0xff]
  %v83 = vld [vmem:[%s1 + $0x1b0] sm:$0xff]
  %v84 = vld [vmem:[%s1 + $0x1b8] sm:$0xff]
  %v85 = vld [vmem:[%s1 + $0x1c0] sm:$0xff]
  %v86 = vld [vmem:[%s1 + $0x1c8] sm:$0xff]
  %v87 = vld [vmem:[%s1 + $0x1d0] sm:$0xff]
  %v88 = vld [vmem:[%s1 + $0x1d8] sm:$0xff]
  %v89 = vld [vmem:[%s1 + $0x1e0] sm:$0xff]
  %v90 = vld [vmem:[%s1 + $0x1e8] sm:$0xff]
  %v91 = vld [vmem:[%s1 + $0x1f0] sm:$0xff]
  %v92 = vld [vmem:[%s1 + $0x1f8] sm:$0xff]
  %v93 = vld [vmem:[%s1 + $0x200] sm:$0xff]
  %v94 = vld [vmem:[%s1 + $0x208] sm:$0xff]
  %v95 = vld [vmem:[%s1 + $0x210] sm:$0xff]
  %v96 = vld [vmem:[%s1 + $0x218] sm:$0xff]
  %v97 = vld [vmem:[%s1 + $0x220] sm:$0xff]
  %v98 = vld [vmem:[%s1 + $0x228] sm:$0xff]
  %v99 = vld [vmem:[%s1 + $0x230] sm:$0xff]
  %v100 = vld [vmem:[%s1 + $0x238] sm:$0xff]
  %v101 = vld [vmem:[%s1 + $0x240] sm:$0xff]
  %v102 = vld [vmem:[%s1 + $0x248] sm:$0xff]
  %v103 = vld [vmem:[%s1 + $0x250] sm:$0xff]
  %v104 = vld [vmem:[%s1 + $0x258] sm:$0xff]
  %v105 = vld [vmem:[%s1 + $0x260] sm:$0xff]
  %v106 = vld [vmem:[%s1 + $0x268] sm:$0xff]
  %v107 = vld [vmem:[%s1 + $0x270] sm:$0xff]
  %v108 = vld [vmem:[%s1 + $0x278] sm:$0xff]
  %v109 = vld [vmem:[%s1 + $0x280] sm:$0xff]
  %v110 = vld [vmem:[%s1 + $0x288] sm:$0xff]
  %v111 = vld [vmem:[%s1 + $0x290] sm:$0xff]
  %v112 = vld [vmem:[%s1 + $0x298] sm:$0xff]
  %v113 = vld [vmem:[%s1 + $0x2a0] sm:$0xff]
  %v114 = vld [vmem:[%s1 + $0x2a8] sm:$0xff]
  %v115 = vld [vmem:[%s1 + $0x2b0] sm:$0xff]
  %v116 = vld [vmem:[%s1 + $0x2b8] sm:$0xff]
  %v117 = vld [vmem:[%s1 + $0x2c0] sm:$0xff]
  %v118 = vld [vmem:[%s1 + $0x2c8] sm:$0xff]
  %v119 = vld [vmem:[%s1 + $0x2d0] sm:$0xff]
  %v120 = vld [vmem:[%s1 + $0x2d8] sm:$0xff]
  %v121 = vld [vmem:[%s1 + $0x2e0] sm:$0xff]
  %v122 = vld [vmem:[%s1 + $0x2e8] sm:$0xff]
  %v123 = vld [vmem:[%s1 + $0x2f0] sm:$0xff]
  %v124 = vld [vmem:[%s1 + $0x2f8] sm:$0xff]
  %v125 = vld [vmem:[%s1 + $0x300] sm:$0xff]
  %v126 = vld [vmem:[%s1 + $0x308] sm:$0xff]
  %v128 = vlaneseq
  %v129 = vshrl.u32 %v128, 7
  %v130 = vsub.s32 0, %v129
  %v131 = vrot.slane %v27, %v130
  %vm133 = vcmask 130048
  %v135 = vsel %vm133, %v26, 0
  %137 = vmatprep.subr.mxu0 0.0
  %138 = vmatpush1.msra.mxu0 %v29
  %139 = vmatprep.subr.mxu0 0.0
  %140 = vmatpush1.msra.mxu0 %v30
  %141 = vmatprep.subr.mxu0 0.0
  %142 = vmatpush1.msra.mxu0 %v31
  %143 = vmatprep.subr.mxu0 0.0
  %144 = vmatpush1.msra.mxu0 %v32
  %145 = vmatprep.subr.mxu0 0.0
  %146 = vmatpush1.msra.mxu0 %v33
  %147 = vmatprep.subr.mxu0 0.0
  %148 = vmatpush1.msra.mxu0 %v34
  %149 = vmatprep.subr.mxu0 0.0
  %150 = vmatpush1.msra.mxu0 %v35
  %151 = vmatprep.subr.mxu0 0.0
  %152 = vmatpush1.msra.mxu0 %v36
  %153 = vmatprep.subr.mxu0 0.0
  %154 = vmatpush1.msra.mxu0 %v37
  %155 = vmatprep.subr.mxu0 0.0
  %156 = vmatpush1.msra.mxu0 %v38
  %157 = vmatprep.subr.mxu0 0.0
  %158 = vmatpush1.msra.mxu0 %v39
  %159 = vmatprep.subr.mxu0 0.0
  %160 = vmatpush1.msra.mxu0 %v40
  %161 = vmatprep.subr.mxu0 0.0
  %162 = vmatpush1.msra.mxu0 %v41
  %163 = vmatprep.subr.mxu0 0.0
  %164 = vmatpush1.msra.mxu0 %v42
  %165 = vmatprep.subr.mxu0 0.0
  %166 = vmatpush1.msra.mxu0 %v43
  %167 = vmatprep.subr.mxu0 0.0
  %168 = vmatpush1.msra.mxu0 %v44
  %169 = vmatprep.subr.mxu0 0.0
  %170 = vmatpush1.msra.mxu0 %v45
  %171 = vmatprep.subr.mxu0 0.0
  %172 = vmatpush1.msra.mxu0 %v46
  %173 = vmatprep.subr.mxu0 0.0
  %174 = vmatpush1.msra.mxu0 %v47
  %175 = vmatprep.subr.mxu0 0.0
  %176 = vmatpush1.msra.mxu0 %v48
  %177 = vmatprep.subr.mxu0 0.0
  %178 = vmatpush1.msra.mxu0 %v49
  %179 = vmatprep.subr.mxu0 0.0
  %180 = vmatpush1.msra.mxu0 %v50
  %181 = vmatprep.subr.mxu0 0.0
  %182 = vmatpush1.msra.mxu0 %v51
  %183 = vmatprep.subr.mxu0 0.0
  %184 = vmatpush1.msra.mxu0 %v52
  %185 = vmatprep.subr.mxu0 0.0
  %186 = vmatpush1.msra.mxu0 %v53
  %187 = vmatprep.subr.mxu0 0.0
  %188 = vmatpush1.msra.mxu0 %v54
  %189 = vmatprep.subr.mxu0 0.0
  %190 = vmatpush1.msra.mxu0 %v55
  %191 = vmatprep.subr.mxu0 0.0
  %192 = vmatpush1.msra.mxu0 %v56
  %193 = vmatprep.subr.mxu0 0.0
  %194 = vmatpush1.msra.mxu0 %v57
  %195 = vmatprep.subr.mxu0 0.0
  %196 = vmatpush1.msra.mxu0 %v58
  %197 = vmatprep.subr.mxu0 0.0
  %198 = vmatpush1.msra.mxu0 %v59
  %199 = vmatprep.subr.mxu0 0.0
  %200 = vmatpush1.msra.mxu0 %v60
  %201 = vmatprep.mubr.f32.mxu0 %v21
  %202 = vmatmul.mubr.f32.gmra.mrb[0].mxu0 %v20
  %v203 = vpop.f32.mrb[0].mxu0
  %v204 = vadd.f32 %v131, %v203
  %v205 = vpop.f32.mrb[0].mxu0
  %206 = vdwg.mxu0
  %207 = vmatprep.subr.mxu0 0.0
  %208 = vmatpush1.msra.mxu0 %v61
  %209 = vmatprep.subr.mxu0 0.0
  %210 = vmatpush1.msra.mxu0 %v62
  %211 = vmatprep.subr.mxu0 0.0
  %212 = vmatpush1.msra.mxu0 %v63
  %213 = vmatprep.subr.mxu0 0.0
  %214 = vmatpush1.msra.mxu0 %v64
  %215 = vmatprep.subr.mxu0 0.0
  %216 = vmatpush1.msra.mxu0 %v65
  %217 = vmatprep.subr.mxu0 0.0
  %218 = vmatpush1.msra.mxu0 %v66
  %219 = vmatprep.subr.mxu0 0.0
  %220 = vmatpush1.msra.mxu0 %v67
  %221 = vmatprep.subr.mxu0 0.0
  %222 = vmatpush1.msra.mxu0 %v68
  %223 = vmatprep.subr.mxu0 0.0
  %224 = vmatpush1.msra.mxu0 %v69
  %225 = vmatprep.subr.mxu0 0.0
  %226 = vmatpush1.msra.mxu0 %v70
  %227 = vmatprep.subr.mxu0 0.0
  %228 = vmatpush1.msra.mxu0 %v71
  %229 = vmatprep.subr.mxu0 0.0
  %230 = vmatpush1.msra.mxu0 %v72
  %231 = vmatprep.subr.mxu0 0.0
  %232 = vmatpush1.msra.mxu0 %v73
  %233 = vmatprep.subr.mxu0 0.0
  %234 = vmatpush1.msra.mxu0 %v74
  %235 = vmatprep.subr.mxu0 0.0
  %236 = vmatpush1.msra.mxu0 %v75
  %237 = vmatprep.subr.mxu0 0.0
  %238 = vmatpush1.msra.mxu0 %v76
  %239 = vmatprep.subr.mxu0 0.0
  %240 = vmatpush1.msra.mxu0 %v77
  %241 = vmatprep.subr.mxu0 0.0
  %242 = vmatpush1.msra.mxu0 %v78
  %243 = vmatprep.subr.mxu0 0.0
  %244 = vmatpush1.msra.mxu0 %v79
  %245 = vmatprep.subr.mxu0 0.0
  %246 = vmatpush1.msra.mxu0 %v80
  %247 = vmatprep.subr.mxu0 0.0
  %248 = vmatpush1.msra.mxu0 %v81
  %249 = vmatprep.subr.mxu0 0.0
  %250 = vmatpush1.msra.mxu0 %v82
  %251 = vmatprep.subr.mxu0 0.0
  %252 = vmatpush1.msra.mxu0 %v83
  %253 = vmatprep.subr.mxu0 0.0
  %254 = vmatpush1.msra.mxu0 %v84
  %255 = vmatprep.subr.mxu0 0.0
  %256 = vmatpush1.msra.mxu0 %v85
  %257 = vmatprep.subr.mxu0 0.0
  %258 = vmatpush1.msra.mxu0 %v86
  %259 = vmatprep.subr.mxu0 0.0
  %260 = vmatpush1.msra.mxu0 %v87
  %261 = vmatprep.subr.mxu0 0.0
  %262 = vmatpush1.msra.mxu0 %v88
  %263 = vmatprep.subr.mxu0 0.0
  %264 = vmatpush1.msra.mxu0 %v89
  %265 = vmatprep.subr.mxu0 0.0
  %266 = vmatpush1.msra.mxu0 %v90
  %267 = vmatprep.subr.mxu0 0.0
  %268 = vmatpush1.msra.mxu0 %v91
  %269 = vmatprep.subr.mxu0 0.0
  %270 = vmatpush1.msra.mxu0 %v92
  %271 = vmatprep.mubr.f32.mxu0 %v23
  %272 = vmatmul.mubr.f32.gmra.mrb[0].mxu0 %v22
  %v273 = vpop.f32.mrb[0].mxu0
  %v274 = vadd.f32 %v204, %v273
  %v275 = vpop.f32.mrb[0].mxu0
  %276 = vdwg.mxu0
  %277 = vmatprep.subr.mxu0 0.0
  %278 = vmatpush1.msra.mxu0 %v93
  %279 = vmatprep.subr.mxu0 0.0
  %280 = vmatpush1.msra.mxu0 %v94
  %281 = vmatprep.subr.mxu0 0.0
  %282 = vmatpush1.msra.mxu0 %v95
  %283 = vmatprep.subr.mxu0 0.0
  %284 = vmatpush1.msra.mxu0 %v96
  %285 = vmatprep.subr.mxu0 0.0
  %286 = vmatpush1.msra.mxu0 %v97
  %287 = vmatprep.subr.mxu0 0.0
  %288 = vmatpush1.msra.mxu0 %v98
  %289 = vmatprep.subr.mxu0 0.0
  %290 = vmatpush1.msra.mxu0 %v99
  %291 = vmatprep.subr.mxu0 0.0
  %292 = vmatpush1.msra.mxu0 %v100
  %293 = vmatprep.subr.mxu0 0.0
  %294 = vmatpush1.msra.mxu0 %v101
  %295 = vmatprep.subr.mxu0 0.0
  %296 = vmatpush1.msra.mxu0 %v102
  %297 = vmatprep.subr.mxu0 0.0
  %298 = vmatpush1.msra.mxu0 %v103
  %299 = vmatprep.subr.mxu0 0.0
  %300 = vmatpush1.msra.mxu0 %v104
  %301 = vmatprep.subr.mxu0 0.0
  %302 = vmatpush1.msra.mxu0 %v105
  %303 = vmatprep.subr.mxu0 0.0
  %304 = vmatpush1.msra.mxu0 %v106
  %305 = vmatprep.subr.mxu0 0.0
  %306 = vmatpush1.msra.mxu0 %v107
  %307 = vmatprep.subr.mxu0 0.0
  %308 = vmatpush1.msra.mxu0 %v108
  %309 = vmatprep.subr.mxu0 0.0
  %310 = vmatpush1.msra.mxu0 %v109
  %311 = vmatprep.subr.mxu0 0.0
  %312 = vmatpush1.msra.mxu0 %v110
  %313 = vmatprep.subr.mxu0 0.0
  %314 = vmatpush1.msra.mxu0 %v111
  %315 = vmatprep.subr.mxu0 0.0
  %316 = vmatpush1.msra.mxu0 %v112
  %317 = vmatprep.subr.mxu0 0.0
  %318 = vmatpush1.msra.mxu0 %v113
  %319 = vmatprep.subr.mxu0 0.0
  %320 = vmatpush1.msra.mxu0 %v114
  %321 = vmatprep.subr.mxu0 0.0
  %322 = vmatpush1.msra.mxu0 %v115
  %323 = vmatprep.subr.mxu0 0.0
  %324 = vmatpush1.msra.mxu0 %v116
  %325 = vmatprep.subr.mxu0 0.0
  %326 = vmatpush1.msra.mxu0 %v117
  %327 = vmatprep.subr.mxu0 0.0
  %328 = vmatpush1.msra.mxu0 %v118
  %329 = vmatprep.subr.mxu0 0.0
  %330 = vmatpush1.msra.mxu0 %v119
  %331 = vmatprep.subr.mxu0 0.0
  %332 = vmatpush1.msra.mxu0 %v120
  %333 = vmatprep.subr.mxu0 0.0
  %334 = vmatpush1.msra.mxu0 %v121
  %335 = vmatprep.subr.mxu0 0.0
  %336 = vmatpush1.msra.mxu0 %v122
  %337 = vmatprep.subr.mxu0 0.0
  %338 = vmatpush1.msra.mxu0 %v123
  %339 = vmatprep.subr.mxu0 0.0
  %340 = vmatpush1.msra.mxu0 %v124
  %341 = vmatprep.mubr.f32.mxu0 %v25
  %342 = vmatmul.mubr.f32.gmra.mrb[0].mxu0 %v24
  %v343 = vpop.f32.mrb[0].mxu0
  %v344 = vadd.f32 %v274, %v343
  %v345 = vpop.f32.mrb[0].mxu0
  %346 = vdwg.mxu0
  %347 = vmatprep.subr.mxu0 0.0
  %348 = vmatpush1.msra.mxu0 %v125
  %349 = vmatprep.subr.mxu0 0.0
  %350 = vmatpush1.msra.mxu0 %v126
  %351 = vmatprep.subr.mxu0 0.0
  %352 = vmatpush1.msra.mxu0 0.0
  %353 = vmatprep.subr.mxu0 0.0
  %354 = vmatpush1.msra.mxu0 0.0
  %355 = vmatprep.subr.mxu0 0.0
  %356 = vmatpush1.msra.mxu0 0.0
  %357 = vmatprep.subr.mxu0 0.0
  %358 = vmatpush1.msra.mxu0 0.0
  %359 = vmatprep.subr.mxu0 0.0
  %360 = vmatpush1.msra.mxu0 0.0
  %361 = vmatprep.subr.mxu0 0.0
  %362 = vmatpush1.msra.mxu0 0.0
  %363 = vmatprep.subr.mxu0 0.0
  %364 = vmatpush1.msra.mxu0 0.0
  %365 = vmatprep.subr.mxu0 0.0
  %366 = vmatpush1.msra.mxu0 0.0
  %367 = vmatprep.subr.mxu0 0.0
  %368 = vmatpush1.msra.mxu0 0.0
  %369 = vmatprep.subr.mxu0 0.0
  %370 = vmatpush1.msra.mxu0 0.0
  %371 = vmatprep.subr.mxu0 0.0
  %372 = vmatpush1.msra.mxu0 0.0
  %373 = vmatprep.subr.mxu0 0.0
  %374 = vmatpush1.msra.mxu0 0.0
  %375 = vmatprep.subr.mxu0 0.0
  %376 = vmatpush1.msra.mxu0 0.0
  %377 = vmatprep.subr.mxu0 0.0
  %378 = vmatpush1.msra.mxu0 0.0
  %379 = vmatprep.subr.mxu0 0.0
  %380 = vmatpush1.msra.mxu0 0.0
  %381 = vmatprep.subr.mxu0 0.0
  %382 = vmatpush1.msra.mxu0 0.0
  %383 = vmatprep.subr.mxu0 0.0
  %384 = vmatpush1.msra.mxu0 0.0
  %385 = vmatprep.subr.mxu0 0.0
  %386 = vmatpush1.msra.mxu0 0.0
  %387 = vmatprep.subr.mxu0 0.0
  %388 = vmatpush1.msra.mxu0 0.0
  %389 = vmatprep.subr.mxu0 0.0
  %390 = vmatpush1.msra.mxu0 0.0
  %391 = vmatprep.subr.mxu0 0.0
  %392 = vmatpush1.msra.mxu0 0.0
  %393 = vmatprep.subr.mxu0 0.0
  %394 = vmatpush1.msra.mxu0 0.0
  %395 = vmatprep.subr.mxu0 0.0
  %396 = vmatpush1.msra.mxu0 0.0
  %397 = vmatprep.subr.mxu0 0.0
  %398 = vmatpush1.msra.mxu0 0.0
  %399 = vmatprep.subr.mxu0 0.0
  %400 = vmatpush1.msra.mxu0 0.0
  %401 = vmatprep.subr.mxu0 0.0
  %402 = vmatpush1.msra.mxu0 0.0
  %403 = vmatprep.subr.mxu0 0.0
  %404 = vmatpush1.msra.mxu0 0.0
  %405 = vmatprep.subr.mxu0 0.0
  %406 = vmatpush1.msra.mxu0 0.0
  %407 = vmatprep.subr.mxu0 0.0
  %408 = vmatpush1.msra.mxu0 0.0
  %409 = vmatprep.subr.mxu0 0.0
  %410 = vmatpush1.msra.mxu0 0.0
  %411 = vmatprep.mubr.f32.mxu0 0.0
  %412 = vmatmul.mubr.f32.gmra.mrb[0].mxu0 %v135
  %v413 = vpop.f32.mrb[0].mxu0
  %v414 = vadd.f32 %v344, %v413
  %v415 = vpop.f32.mrb[0].mxu0
  %416 = vdwg.mxu0
  %v417 = vmax.f32 %v414, 0.0
  %v418 = vld [vmem:[%s3] sm:$0xff]
  %v419 = vld [vmem:[%s3 + $0x8] sm:$0xff]
  %v420 = vld [vmem:[%s3 + $0x10] sm:$0xff]
  %v421 = vld [vmem:[%s3 + $0x18] sm:$0xff]
  %v422 = vld [vmem:[%s3 + $0x20] sm:$0xff]
  %v423 = vld [vmem:[%s3 + $0x28] sm:$0xff]
  %v424 = vld [vmem:[%s3 + $0x30] sm:$0xff]
  %v425 = vld [vmem:[%s3 + $0x38] sm:$0xff]
  %v426 = vld [vmem:[%s3 + $0x40] sm:$0xff]
  %v427 = vld [vmem:[%s3 + $0x48] sm:$0xff]
  %v428 = vld [vmem:[%s3 + $0x50] sm:$0xff]
  %v429 = vld [vmem:[%s3 + $0x58] sm:$0xff]
  %v430 = vld [vmem:[%s3 + $0x60] sm:$0xff]
  %v431 = vld [vmem:[%s3 + $0x68] sm:$0xff]
  %v432 = vld [vmem:[%s3 + $0x70] sm:$0xff]
  %v433 = vld [vmem:[%s3 + $0x78] sm:$0xff]
  %v435 = vlaneseq
  %v436 = vshrl.u32 %v435, 7
  %v437 = vsub.s32 0, %v436
  %v438 = vrot.slane %v28, %v437
  %440 = vmatprep.subr.mxu0 0.0
  %441 = vmatpush1.msra.mxu0 %v418
  %442 = vmatprep.subr.mxu0 0.0
  %443 = vmatpush1.msra.mxu0 %v419
  %444 = vmatprep.subr.mxu0 0.0
  %445 = vmatpush1.msra.mxu0 %v420
  %446 = vmatprep.subr.mxu0 0.0
  %447 = vmatpush1.msra.mxu0 %v421
  %448 = vmatprep.subr.mxu0 0.0
  %449 = vmatpush1.msra.mxu0 %v422
  %450 = vmatprep.subr.mxu0 0.0
  %451 = vmatpush1.msra.mxu0 %v423
  %452 = vmatprep.subr.mxu0 0.0
  %453 = vmatpush1.msra.mxu0 %v424
  %454 = vmatprep.subr.mxu0 0.0
  %455 = vmatpush1.msra.mxu0 %v425
  %456 = vmatprep.subr.mxu0 0.0
  %457 = vmatpush1.msra.mxu0 %v426
  %458 = vmatprep.subr.mxu0 0.0
  %459 = vmatpush1.msra.mxu0 %v427
  %460 = vmatprep.subr.mxu0 0.0
  %461 = vmatpush1.msra.mxu0 %v428
  %462 = vmatprep.subr.mxu0 0.0
  %463 = vmatpush1.msra.mxu0 %v429
  %464 = vmatprep.subr.mxu0 0.0
  %465 = vmatpush1.msra.mxu0 %v430
  %466 = vmatprep.subr.mxu0 0.0
  %467 = vmatpush1.msra.mxu0 %v431
  %468 = vmatprep.subr.mxu0 0.0
  %469 = vmatpush1.msra.mxu0 %v432
  %470 = vmatprep.subr.mxu0 0.0
  %471 = vmatpush1.msra.mxu0 %v433
  %472 = vmatprep.subr.mxu0 0.0
  %473 = vmatpush1.msra.mxu0 0.0
  %474 = vmatprep.subr.mxu0 0.0
  %475 = vmatpush1.msra.mxu0 0.0
  %476 = vmatprep.subr.mxu0 0.0
  %477 = vmatpush1.msra.mxu0 0.0
  %478 = vmatprep.subr.mxu0 0.0
  %479 = vmatpush1.msra.mxu0 0.0
  %480 = vmatprep.subr.mxu0 0.0
  %481 = vmatpush1.msra.mxu0 0.0
  %482 = vmatprep.subr.mxu0 0.0
  %483 = vmatpush1.msra.mxu0 0.0
  %484 = vmatprep.subr.mxu0 0.0
  %485 = vmatpush1.msra.mxu0 0.0
  %486 = vmatprep.subr.mxu0 0.0
  %487 = vmatpush1.msra.mxu0 0.0
  %488 = vmatprep.subr.mxu0 0.0
  %489 = vmatpush1.msra.mxu0 0.0
  %490 = vmatprep.subr.mxu0 0.0
  %491 = vmatpush1.msra.mxu0 0.0
  %492 = vmatprep.subr.mxu0 0.0
  %493 = vmatpush1.msra.mxu0 0.0
  %494 = vmatprep.subr.mxu0 0.0
  %495 = vmatpush1.msra.mxu0 0.0
  %496 = vmatprep.subr.mxu0 0.0
  %497 = vmatpush1.msra.mxu0 0.0
  %498 = vmatprep.subr.mxu0 0.0
  %499 = vmatpush1.msra.mxu0 0.0
  %500 = vmatprep.subr.mxu0 0.0
  %501 = vmatpush1.msra.mxu0 0.0
  %502 = vmatprep.subr.mxu0 0.0
  %503 = vmatpush1.msra.mxu0 0.0
  %504 = vmatprep.mubr.f32.mxu0 0.0
  %505 = vmatmul.mubr.f32.gmra.mrb[0].mxu0 %v417
  %v506 = vpop.f32.mrb[0].mxu0
  %v507 = vadd.f32 %v438, %v506
  %v508 = vpop.f32.mrb[0].mxu0
  %509 = vdwg.mxu0
  %510 = vst [vmem:[%s5] sm:$0xff] %v507
  // Predicated region
  $region22: #{nn_forward.1} parent=0 // pred_check
    _
  $region23: #{nn_forward.1} parent=0 // pred_check_branch
    %512 = sbr.rel (0) target = $region25
  $region24: #{nn_forward.1} parent=0 // pred_region
    _
  $region25: #{nn_forward.1} parent=0 // pred_fallthru
    _
  // Predicated region
  $region26: #{nn_forward.1} parent=0 // pred_check
    _
  $region27: #{nn_forward.1} parent=0 // pred_check_branch
    %514 = sbr.rel (0) target = $region29
  $region28: #{nn_forward.1} parent=0 // pred_region
    _
  $region29: #{nn_forward.1} parent=0 // pred_fallthru
    _

</llo_original>
